<compile_context>
chip_gen: v6e
topology: v6e:2x2x1
jax: 0.10.0
libtpu: 0.0.40
codegen_flags: <defaults>
</compile_context>

<pallas_src>
import numpy as np
import jax
import jax.numpy as jnp
from jax.experimental import pallas as pl
from jax.experimental.pallas import tpu as pltpu

# ---- problem sizes (small, synthetic) --------------------------------------
B         = 2     # batch size
FEAT_DIM  = 64    # dataset.feat_dim
REP_DIM   = 32    # args.rep_dim
EMB_DIM   = 16    # attr word-embedding dim
NUM_ATTR  = 6
NUM_OBJ   = 5
H_CLS     = 32    # args.fc_cls  = [32]
H_ATT     = 32    # args.fc_att  = [32]
H_CMP     = 32    # args.fc_compress = [32]

M = B * NUM_ATTR                    # flat "repeat/tile" row count = 12

# ---- bf16 dense-weight block layout (rows x 96 lanes), 16-row aligned ------
R_HEAD    = 0                       # (64, 96)  [rep_w | rep_w | rep_w @ obj_w1]
R_OBJ2    = 64                      # (32, 5)   obj classifier layer 2
R_WOR     = 96                      # (64, 64)  block-diag fc_out layer-1 (rep part), CoN|DeCoN
R_WO2     = 160                     # (64, 64)  block-diag fc_out layer-2, CoN|DeCoN
BF16_ROWS = 224
BF16_LANES = 96

# ---- f32 block layout (rows x 96 lanes), 8-row aligned ---------------------
R_EB     = 0                        # (12, 2)   one-hot: repeat_on(pos_img, A, 0)
R_EA     = 16                       # (12, 6)   one-hot: attr id of each flat row
R_EBT    = 32                       # (2, 12)   one-hot: regroup flat rows -> (B, A)
R_ATT    = 40                       # (12, 64)  1 + sigmoid(attention), tiled, [CoN|DeCoN]
R_AOUT   = 56                       # (12, 64)  attr_emb @ woa + bo1, tiled, [CoN|DeCoN]
R_DMASK  = 72                       # (64, 2)   0/1 mask: col0 sums plus-lanes, col1 minus-lanes
R_BIAS   = 136                      # (8, 96)   row0 head_b, row1 obj_b2, row2 bo2
F32_ROWS = 144
F32_LANES = 96

VMEM_SPEC = pl.BlockSpec(memory_space=pltpu.MemorySpace.VMEM)


# ---------------------------------------------------------------------------
# The fused kernel
# ---------------------------------------------------------------------------
def _symnet_kernel(x_ref, w_ref, p_ref, out_ref):
    f32 = jnp.float32
    bf16 = jnp.bfloat16

    def mm(a, b_bf16):                          # dense layer: bf16 MXU, f32 accumulation
        return jnp.dot(a.astype(bf16), b_bf16, preferred_element_type=f32)

    def softmax(z):
        e = jnp.exp(z - jnp.max(z, axis=-1, keepdims=True))
        return e * pl.reciprocal(jnp.sum(e, axis=-1, keepdims=True), approx=True)

    # one load of the whole bias block, in-register row slices
    bias = p_ref[R_BIAS:R_BIAS + 8, :]                      # (8, 96)
    head_b = bias[0:1, 0:BF16_LANES]                        # (1, 96)
    obj_b2 = bias[1:2, 0:NUM_OBJ]                           # (1, 5)
    bo2 = bias[2:3, 0:2 * REP_DIM]                          # (1, 64)

    x = x_ref[...]                                          # (B, FEAT)

    # ---- fused rep_embedder + obj-cls layer-1 (single MXU push) ----
    y = mm(x, w_ref[R_HEAD:R_HEAD + FEAT_DIM, 0:BF16_LANES]) + head_b       # (B, 96)
    pos_img2 = y[:, 0:2 * REP_DIM]                          # (B, 64) = [pos_img | pos_img]
    h = jnp.maximum(y[:, 2 * REP_DIM:BF16_LANES], 0.0)      # (B, 32)

    # ---- obj classifier layer-2 + softmax (branches off the attr chain) ----
    s = mm(h, w_ref[R_OBJ2:R_OBJ2 + H_CLS, 0:NUM_OBJ]) + obj_b2             # (B, 5)
    prob_obj = softmax(s)

    # ---- repeat_on(pos_img) via exact 0/1 selection matmul (f32, no reshape) ----
    eb = p_ref[R_EB:R_EB + M, 0:B]                          # (12, 2)
    rep2 = jnp.dot(eb, pos_img2, preferred_element_type=f32)                # (12, 64)

    # ---- fused CoN(+)/DeCoN(-) transformers (attention & attr branch precomputed) ----
    attp1 = p_ref[R_ATT:R_ATT + M, 0:2 * REP_DIM]           # (12, 64)  sigmoid(att)+1
    aout = p_ref[R_AOUT:R_AOUT + M, 0:2 * H_CMP]            # (12, 64)  attr@woa + bo1
    rep_g = attp1 * rep2                                    # attention*rep + rep
    h2 = jnp.maximum(mm(rep_g, w_ref[R_WOR:R_WOR + 2 * REP_DIM, 0:2 * H_CMP]) + aout, 0.0)
    feats = mm(h2, w_ref[R_WO2:R_WO2 + 2 * H_CMP, 0:2 * REP_DIM]) + bo2     # (12, 64)
    # feats = [feat_plus | feat_minus], each (M, REP_DIM)

    # ---- RMD (L2 + softmax): mask-matmul reduction + single regroup matmul ----
    diff = feats - rep2
    sq = diff * diff                                        # (12, 64)
    dmask = p_ref[R_DMASK:R_DMASK + 2 * REP_DIM, 0:2]       # (64, 2) exact 0/1
    d = jnp.sqrt(jnp.dot(sq, dmask, preferred_element_type=f32))            # (12, 2)

    ea = p_ref[R_EA:R_EA + M, 0:NUM_ATTR]                   # (12, 6)
    ebt = p_ref[R_EBT:R_EBT + B, 0:M]                       # (2, 12)
    dsel = jnp.concatenate([d[:, 0:1] * ea, d[:, 1:2] * ea], axis=-1)       # (12, 12)
    dba = jnp.dot(ebt, dsel, preferred_element_type=f32)                    # (2, 12)

    p_plus = softmax(-dba[:, 0:NUM_ATTR])
    p_minus = softmax(dba[:, NUM_ATTR:2 * NUM_ATTR])
    prob_attr = 0.5 * (p_plus + p_minus)                    # (B, 6)

    # ---- single lane-packed output: attr lanes 0:6, obj lanes 8:13 ----
    pad_a = jnp.zeros((B, 8 - NUM_ATTR), f32)
    pad_o = jnp.zeros((B, 16 - 8 - NUM_OBJ), f32)
    out_ref[...] = jnp.concatenate([prob_attr, pad_a, prob_obj, pad_o], axis=-1)


@jax.jit
def model_forward(weights_bf16, params_f32, pos_feature):
    out = pl.pallas_call(
        _symnet_kernel,
        out_shape=jax.ShapeDtypeStruct((B, 16), jnp.float32),
        in_specs=[VMEM_SPEC, VMEM_SPEC, VMEM_SPEC],
        out_specs=VMEM_SPEC,
        cost_estimate=pl.CostEstimate(
            flops=120_000, transcendentals=256, bytes_accessed=80_000),
    )(pos_feature, weights_bf16, params_f32)
    return out[:, 0:NUM_ATTR], out[:, 8:8 + NUM_OBJ]


# ---------------------------------------------------------------------------
# Parameter initialization (deterministic, synthetic) -- same structure as the module
# ---------------------------------------------------------------------------
def _dense(key, fan_in, fan_out):
    kw, kb = jax.random.split(key)
    w = jax.random.normal(kw, (fan_in, fan_out), jnp.float32) * 0.1
    b = jax.random.normal(kb, (fan_out,), jnp.float32) * 0.01
    return w, b


def init_params(key):
    keys = jax.random.split(key, 16)
    params = {}
    params["attr_emb"] = jax.random.normal(keys[0], (NUM_ATTR, EMB_DIM), jnp.float32)
    params["rep_w"], params["rep_b"] = _dense(keys[1], FEAT_DIM, REP_DIM)

    def cls_params(k, num_class):
        k1, k2 = jax.random.split(k)
        w1, b1 = _dense(k1, REP_DIM, H_CLS)
        w2, b2 = _dense(k2, H_CLS, num_class)
        return {"w1": w1, "b1": b1, "w2": w2, "b2": b2}

    params["obj_cls"] = cls_params(keys[2], NUM_OBJ)

    def transformer_params(k):
        k1, k2, k3, k4, k5 = jax.random.split(k, 5)
        wa1, ba1 = _dense(k1, EMB_DIM, H_ATT)
        wa2, ba2 = _dense(k2, H_ATT, REP_DIM)
        wor, bo1 = _dense(k3, REP_DIM, H_CMP)      # fc_out layer-1, rep part
        woa, _ = _dense(k4, EMB_DIM, H_CMP)        # fc_out layer-1, attr part
        wo2, bo2 = _dense(k5, H_CMP, REP_DIM)
        return {"wa1": wa1, "ba1": ba1, "wa2": wa2, "ba2": ba2,
                "wor": wor, "woa": woa, "bo1": bo1, "wo2": wo2, "bo2": bo2}

    params["CoN"] = transformer_params(keys[3])
    params["DeCoN"] = transformer_params(keys[4])
    return params


def _block_diag(a, b):
    out = np.zeros((a.shape[0] + b.shape[0], a.shape[1] + b.shape[1]), np.float32)
    out[:a.shape[0], :a.shape[1]] = a
    out[a.shape[0]:, a.shape[1]:] = b
    return out


def pack_params(params):
    """Host-side packing + precompute.

    Returns (weights_bf16, params_f32):
      weights_bf16 : (224, 96) bf16  -- dense matmul weights (rep_embedder folded into the
                     obj-cls first layer; CoN/DeCoN lane-stacked / block-diagonal).
      params_f32   : (144, 96) f32   -- 0/1 selection matrices, the precomputed x-independent
                     attention & attr@woa branch (tiled to flat layout), the L2 lane mask,
                     and all biases.
    """
    p = jax.tree_util.tree_map(lambda a: np.asarray(a, np.float32), params)
    con, dec = p["CoN"], p["DeCoN"]
    attr = p["attr_emb"]
    rep_w, rep_b = p["rep_w"], p["rep_b"]
    oc = p["obj_cls"]

    # ---- bf16 dense-weight block ----
    wblk = np.zeros((BF16_ROWS, BF16_LANES), np.float32)
    wblk[R_HEAD:R_HEAD + FEAT_DIM, 0:REP_DIM] = rep_w
    wblk[R_HEAD:R_HEAD + FEAT_DIM, REP_DIM:2 * REP_DIM] = rep_w
    wblk[R_HEAD:R_HEAD + FEAT_DIM, 2 * REP_DIM:BF16_LANES] = rep_w @ oc["w1"]
    wblk[R_OBJ2:R_OBJ2 + H_CLS, 0:NUM_OBJ] = oc["w2"]
    wblk[R_WOR:R_WOR + 2 * REP_DIM, 0:2 * H_CMP] = _block_diag(con["wor"], dec["wor"])
    wblk[R_WO2:R_WO2 + 2 * H_CMP, 0:2 * REP_DIM] = _block_diag(con["wo2"], dec["wo2"])

    # ---- f32 block ----
    pblk = np.zeros((F32_ROWS, F32_LANES), np.float32)

    m_idx = np.arange(M)
    eb = (m_idx[:, None] // NUM_ATTR == np.arange(B)[None, :]).astype(np.float32)
    ea = (m_idx[:, None] % NUM_ATTR == np.arange(NUM_ATTR)[None, :]).astype(np.float32)
    pblk[R_EB:R_EB + M, 0:B] = eb
    pblk[R_EA:R_EA + M, 0:NUM_ATTR] = ea
    pblk[R_EBT:R_EBT + B, 0:M] = eb.T

    # precomputed x-independent branch of each Transformer
    def branch(q):
        hid = np.maximum(attr @ q["wa1"] + q["ba1"], 0.0)
        att = 1.0 / (1.0 + np.exp(-(hid @ q["wa2"] + q["ba2"])))     # sigmoid
        aout = attr @ q["woa"]
        return att, aout

    att_c, aout_c = branch(con)
    att_d, aout_d = branch(dec)
    attp1 = np.concatenate([att_c, att_d], axis=1) + 1.0             # (6, 64) sigmoid+1
    aout = (np.concatenate([aout_c, aout_d], axis=1)
            + np.concatenate([con["bo1"], dec["bo1"]])[None, :])     # (6, 64) +bo1
    pblk[R_ATT:R_ATT + M, 0:2 * REP_DIM] = np.tile(attp1, (B, 1))    # tile_on(..., B, 0)
    pblk[R_AOUT:R_AOUT + M, 0:2 * H_CMP] = np.tile(aout, (B, 1))

    # 0/1 mask summing the plus-lanes into col 0 and minus-lanes into col 1
    dmask = np.zeros((2 * REP_DIM, 2), np.float32)
    dmask[:REP_DIM, 0] = 1.0
    dmask[REP_DIM:, 1] = 1.0
    pblk[R_DMASK:R_DMASK + 2 * REP_DIM, 0:2] = dmask

    # biases (rep_embedder + obj-cls layer-1 folded into head_b)
    head_b = np.zeros((BF16_LANES,), np.float32)
    head_b[0:REP_DIM] = rep_b
    head_b[REP_DIM:2 * REP_DIM] = rep_b
    head_b[2 * REP_DIM:] = rep_b @ oc["w1"] + oc["b1"]
    pblk[R_BIAS + 0, 0:BF16_LANES] = head_b
    pblk[R_BIAS + 1, 0:NUM_OBJ] = oc["b2"]
    pblk[R_BIAS + 2, 0:2 * REP_DIM] = np.concatenate([con["bo2"], dec["bo2"]])

    return jnp.asarray(wblk).astype(jnp.bfloat16), jnp.asarray(pblk)


# ---------------------------------------------------------------------------
# Pure-JAX reference of Model.forward (require_loss=False) for a sanity check
# ---------------------------------------------------------------------------
def reference_forward(params, pos_feature):
    def mlp2(x, w1, b1, w2, b2):
        return jax.nn.relu(x @ w1 + b1) @ w2 + b2

    pos_img = pos_feature @ params["rep_w"] + params["rep_b"]
    oc = params["obj_cls"]
    prob_obj = jax.nn.softmax(mlp2(pos_img, oc["w1"], oc["b1"], oc["w2"], oc["b2"]), -1)

    tile_attr = jnp.tile(params["attr_emb"], (B, 1))
    repeat_img = jnp.repeat(pos_img, NUM_ATTR, axis=0)

    def transformer(rep, v_attr, q):
        att = jax.nn.sigmoid(mlp2(v_attr, q["wa1"], q["ba1"], q["wa2"], q["ba2"]))
        rep_g = att * rep + rep
        hid = jax.nn.relu(rep_g @ q["wor"] + v_attr @ q["woa"] + q["bo1"])
        return hid @ q["wo2"] + q["bo2"]

    feat_plus = transformer(repeat_img, tile_attr, params["CoN"])
    feat_minus = transformer(repeat_img, tile_attr, params["DeCoN"])
    d_plus = jnp.linalg.norm(feat_plus - repeat_img, axis=-1).reshape(B, NUM_ATTR)
    d_minus = jnp.linalg.norm(feat_minus - repeat_img, axis=-1).reshape(B, NUM_ATTR)
    prob_attr = 0.5 * (jax.nn.softmax(-d_plus, -1) + jax.nn.softmax(d_minus, -1))
    return prob_attr, prob_obj


if __name__ == "__main__":
    key = jax.random.PRNGKey(0)
    kp, kx = jax.random.split(key)
    params = init_params(kp)
    w_bf16, p_f32 = pack_params(params)
    pos_feature = jax.random.normal(kx, (B, FEAT_DIM), jnp.float32)

    prob_attr, prob_obj = model_forward(w_bf16, p_f32, pos_feature)
    jax.block_until_ready((prob_attr, prob_obj))

    assert prob_attr.shape == (B, NUM_ATTR)
    assert prob_obj.shape == (B, NUM_OBJ)

    ref_attr, ref_obj = reference_forward(params, pos_feature)
    np.testing.assert_allclose(np.asarray(prob_attr), np.asarray(ref_attr),
                               atol=5e-2, rtol=0.0)
    np.testing.assert_allclose(np.asarray(prob_obj), np.asarray(ref_obj),
                               atol=5e-2, rtol=0.0)
    print("KERNEL_OK")
</pallas_src>

<mosaic_0001>
module attributes {stable_mosaic.version = 11 : i64} {
  func.func @_symnet_kernel(%arg0: memref<2x64xf32, #tpu.memory_space<vmem>>, %arg1: memref<224x96xbf16, #tpu.memory_space<vmem>>, %arg2: memref<144x96xf32, #tpu.memory_space<vmem>>, %arg3: memref<2x16xf32, #tpu.memory_space<vmem>>) attributes {dimension_semantics = [], scalar_prefetch = 0 : i64, scratch_operands = 0 : i64, tpu.core_type = #tpu.core_type<tc>} {
    %c136 = arith.constant 136 : index
    %c0 = arith.constant 0 : index
    %0 = vector.load %arg2[%c136, %c0] : memref<144x96xf32, #tpu.memory_space<vmem>>, vector<8x96xf32>
    %1 = vector.extract_strided_slice %0 {offsets = [0, 0], sizes = [1, 96], strides = [1, 1]} : vector<8x96xf32> to vector<1x96xf32>
    %2 = vector.extract_strided_slice %0 {offsets = [1, 0], sizes = [1, 5], strides = [1, 1]} : vector<8x96xf32> to vector<1x5xf32>
    %3 = vector.extract_strided_slice %0 {offsets = [2, 0], sizes = [1, 64], strides = [1, 1]} : vector<8x96xf32> to vector<1x64xf32>
    %c0_0 = arith.constant 0 : index
    %c0_1 = arith.constant 0 : index
    %4 = vector.load %arg0[%c0_0, %c0_1] : memref<2x64xf32, #tpu.memory_space<vmem>>, vector<2x64xf32>
    %c0_2 = arith.constant 0 : index
    %c0_3 = arith.constant 0 : index
    %5 = vector.load %arg1[%c0_2, %c0_3] : memref<224x96xbf16, #tpu.memory_space<vmem>>, vector<64x96xbf16>
    %6 = arith.truncf %4 : vector<2x64xf32> to vector<2x64xbf16>
    %cst = arith.constant dense<0.000000e+00> : vector<2x96xf32>
    %7 = tpu.matmul %6, %5, %cst {dimension_numbers = #tpu.dot_dimension_numbers<[1], [0], [0], [1], [0, 0, 1, 1], [], []>} : vector<2x64xbf16>, vector<64x96xbf16>, vector<2x96xf32> -> vector<2x96xf32>
    %8 = vector.broadcast %1 : vector<1x96xf32> to vector<2x96xf32>
    %9 = arith.addf %7, %8 : vector<2x96xf32>
    %10 = vector.extract_strided_slice %9 {offsets = [0, 0], sizes = [2, 64], strides = [1, 1]} : vector<2x96xf32> to vector<2x64xf32>
    %11 = vector.extract_strided_slice %9 {offsets = [0, 64], sizes = [2, 32], strides = [1, 1]} : vector<2x96xf32> to vector<2x32xf32>
    %cst_4 = arith.constant 0.000000e+00 : f32
    %12 = vector.broadcast %cst_4 : f32 to vector<2x32xf32>
    %13 = arith.maximumf %11, %12 : vector<2x32xf32>
    %c64 = arith.constant 64 : index
    %c0_5 = arith.constant 0 : index
    %14 = vector.load %arg1[%c64, %c0_5] : memref<224x96xbf16, #tpu.memory_space<vmem>>, vector<32x5xbf16>
    %15 = arith.truncf %13 : vector<2x32xf32> to vector<2x32xbf16>
    %cst_6 = arith.constant dense<0.000000e+00> : vector<2x5xf32>
    %16 = tpu.matmul %15, %14, %cst_6 {dimension_numbers = #tpu.dot_dimension_numbers<[1], [0], [0], [1], [0, 0, 1, 1], [], []>} : vector<2x32xbf16>, vector<32x5xbf16>, vector<2x5xf32> -> vector<2x5xf32>
    %17 = vector.broadcast %2 : vector<1x5xf32> to vector<2x5xf32>
    %18 = arith.addf %16, %17 : vector<2x5xf32>
    %cst_7 = arith.constant dense<0xFF800000> : vector<2xf32>
    %19 = vector.multi_reduction <maximumf>, %18, %cst_7 [1] : vector<2x5xf32> to vector<2xf32>
    %20 = vector.shape_cast %19 : vector<2xf32> to vector<2x1xf32>
    %21 = vector.broadcast %20 : vector<2x1xf32> to vector<2x5xf32>
    %22 = arith.subf %18, %21 : vector<2x5xf32>
    %23 = math.exp %22 : vector<2x5xf32>
    %cst_8 = arith.constant dense<0.000000e+00> : vector<2xf32>
    %24 = vector.multi_reduction <add>, %23, %cst_8 [1] : vector<2x5xf32> to vector<2xf32>
    %25 = vector.shape_cast %24 : vector<2xf32> to vector<2x1xf32>
    %26 = tpu.reciprocal %25 {approx = true} : vector<2x1xf32> -> vector<2x1xf32>
    %27 = vector.broadcast %26 : vector<2x1xf32> to vector<2x5xf32>
    %28 = arith.mulf %23, %27 : vector<2x5xf32>
    %c0_9 = arith.constant 0 : index
    %c0_10 = arith.constant 0 : index
    %29 = vector.load %arg2[%c0_9, %c0_10] : memref<144x96xf32, #tpu.memory_space<vmem>>, vector<12x2xf32>
    %cst_11 = arith.constant dense<0.000000e+00> : vector<12x64xf32>
    %30 = tpu.matmul %29, %10, %cst_11 {dimension_numbers = #tpu.dot_dimension_numbers<[1], [0], [0], [1], [0, 0, 1, 1], [], []>} : vector<12x2xf32>, vector<2x64xf32>, vector<12x64xf32> -> vector<12x64xf32>
    %c40 = arith.constant 40 : index
    %c0_12 = arith.constant 0 : index
    %31 = vector.load %arg2[%c40, %c0_12] : memref<144x96xf32, #tpu.memory_space<vmem>>, vector<12x64xf32>
    %c56 = arith.constant 56 : index
    %c0_13 = arith.constant 0 : index
    %32 = vector.load %arg2[%c56, %c0_13] : memref<144x96xf32, #tpu.memory_space<vmem>>, vector<12x64xf32>
    %33 = arith.mulf %31, %30 : vector<12x64xf32>
    %c96 = arith.constant 96 : index
    %c0_14 = arith.constant 0 : index
    %34 = vector.load %arg1[%c96, %c0_14] : memref<224x96xbf16, #tpu.memory_space<vmem>>, vector<64x64xbf16>
    %35 = arith.truncf %33 : vector<12x64xf32> to vector<12x64xbf16>
    %cst_15 = arith.constant dense<0.000000e+00> : vector<12x64xf32>
    %36 = tpu.matmul %35, %34, %cst_15 {dimension_numbers = #tpu.dot_dimension_numbers<[1], [0], [0], [1], [0, 0, 1, 1], [], []>} : vector<12x64xbf16>, vector<64x64xbf16>, vector<12x64xf32> -> vector<12x64xf32>
    %37 = arith.addf %36, %32 : vector<12x64xf32>
    %cst_16 = arith.constant 0.000000e+00 : f32
    %38 = vector.broadcast %cst_16 : f32 to vector<12x64xf32>
    %39 = arith.maximumf %37, %38 : vector<12x64xf32>
    %c160 = arith.constant 160 : index
    %c0_17 = arith.constant 0 : index
    %40 = vector.load %arg1[%c160, %c0_17] : memref<224x96xbf16, #tpu.memory_space<vmem>>, vector<64x64xbf16>
    %41 = arith.truncf %39 : vector<12x64xf32> to vector<12x64xbf16>
    %cst_18 = arith.constant dense<0.000000e+00> : vector<12x64xf32>
    %42 = tpu.matmul %41, %40, %cst_18 {dimension_numbers = #tpu.dot_dimension_numbers<[1], [0], [0], [1], [0, 0, 1, 1], [], []>} : vector<12x64xbf16>, vector<64x64xbf16>, vector<12x64xf32> -> vector<12x64xf32>
    %43 = vector.broadcast %3 : vector<1x64xf32> to vector<12x64xf32>
    %44 = arith.addf %42, %43 : vector<12x64xf32>
    %45 = arith.subf %44, %30 : vector<12x64xf32>
    %46 = arith.mulf %45, %45 : vector<12x64xf32>
    %c72 = arith.constant 72 : index
    %c0_19 = arith.constant 0 : index
    %47 = vector.load %arg2[%c72, %c0_19] : memref<144x96xf32, #tpu.memory_space<vmem>>, vector<64x2xf32>
    %cst_20 = arith.constant dense<0.000000e+00> : vector<12x2xf32>
    %48 = tpu.matmul %46, %47, %cst_20 {dimension_numbers = #tpu.dot_dimension_numbers<[1], [0], [0], [1], [0, 0, 1, 1], [], []>} : vector<12x64xf32>, vector<64x2xf32>, vector<12x2xf32> -> vector<12x2xf32>
    %49 = math.sqrt %48 : vector<12x2xf32>
    %c16 = arith.constant 16 : index
    %c0_21 = arith.constant 0 : index
    %50 = vector.load %arg2[%c16, %c0_21] : memref<144x96xf32, #tpu.memory_space<vmem>>, vector<12x6xf32>
    %c32 = arith.constant 32 : index
    %c0_22 = arith.constant 0 : index
    %51 = vector.load %arg2[%c32, %c0_22] : memref<144x96xf32, #tpu.memory_space<vmem>>, vector<2x12xf32>
    %52 = vector.extract_strided_slice %49 {offsets = [0, 0], sizes = [12, 1], strides = [1, 1]} : vector<12x2xf32> to vector<12x1xf32>
    %53 = vector.broadcast %52 : vector<12x1xf32> to vector<12x6xf32>
    %54 = arith.mulf %53, %50 : vector<12x6xf32>
    %55 = vector.extract_strided_slice %49 {offsets = [0, 1], sizes = [12, 1], strides = [1, 1]} : vector<12x2xf32> to vector<12x1xf32>
    %56 = vector.broadcast %55 : vector<12x1xf32> to vector<12x6xf32>
    %57 = arith.mulf %56, %50 : vector<12x6xf32>
    %58 = tpu.concatenate %54, %57 in 1 : vector<12x6xf32>, vector<12x6xf32> -> vector<12x12xf32>
    %cst_23 = arith.constant dense<0.000000e+00> : vector<2x12xf32>
    %59 = tpu.matmul %51, %58, %cst_23 {dimension_numbers = #tpu.dot_dimension_numbers<[1], [0], [0], [1], [0, 0, 1, 1], [], []>} : vector<2x12xf32>, vector<12x12xf32>, vector<2x12xf32> -> vector<2x12xf32>
    %60 = vector.extract_strided_slice %59 {offsets = [0, 0], sizes = [2, 6], strides = [1, 1]} : vector<2x12xf32> to vector<2x6xf32>
    %cst_24 = arith.constant 0.000000e+00 : f32
    %61 = vector.broadcast %cst_24 : f32 to vector<2x6xf32>
    %62 = arith.subf %61, %60 : vector<2x6xf32>
    %cst_25 = arith.constant dense<0xFF800000> : vector<2xf32>
    %63 = vector.multi_reduction <maximumf>, %62, %cst_25 [1] : vector<2x6xf32> to vector<2xf32>
    %64 = vector.shape_cast %63 : vector<2xf32> to vector<2x1xf32>
    %65 = vector.broadcast %64 : vector<2x1xf32> to vector<2x6xf32>
    %66 = arith.subf %62, %65 : vector<2x6xf32>
    %67 = math.exp %66 : vector<2x6xf32>
    %cst_26 = arith.constant dense<0.000000e+00> : vector<2xf32>
    %68 = vector.multi_reduction <add>, %67, %cst_26 [1] : vector<2x6xf32> to vector<2xf32>
    %69 = vector.shape_cast %68 : vector<2xf32> to vector<2x1xf32>
    %70 = tpu.reciprocal %69 {approx = true} : vector<2x1xf32> -> vector<2x1xf32>
    %71 = vector.broadcast %70 : vector<2x1xf32> to vector<2x6xf32>
    %72 = arith.mulf %67, %71 : vector<2x6xf32>
    %73 = vector.extract_strided_slice %59 {offsets = [0, 6], sizes = [2, 6], strides = [1, 1]} : vector<2x12xf32> to vector<2x6xf32>
    %cst_27 = arith.constant dense<0xFF800000> : vector<2xf32>
    %74 = vector.multi_reduction <maximumf>, %73, %cst_27 [1] : vector<2x6xf32> to vector<2xf32>
    %75 = vector.shape_cast %74 : vector<2xf32> to vector<2x1xf32>
    %76 = vector.broadcast %75 : vector<2x1xf32> to vector<2x6xf32>
    %77 = arith.subf %73, %76 : vector<2x6xf32>
    %78 = math.exp %77 : vector<2x6xf32>
    %cst_28 = arith.constant dense<0.000000e+00> : vector<2xf32>
    %79 = vector.multi_reduction <add>, %78, %cst_28 [1] : vector<2x6xf32> to vector<2xf32>
    %80 = vector.shape_cast %79 : vector<2xf32> to vector<2x1xf32>
    %81 = tpu.reciprocal %80 {approx = true} : vector<2x1xf32> -> vector<2x1xf32>
    %82 = vector.broadcast %81 : vector<2x1xf32> to vector<2x6xf32>
    %83 = arith.mulf %78, %82 : vector<2x6xf32>
    %84 = arith.addf %72, %83 : vector<2x6xf32>
    %cst_29 = arith.constant 5.000000e-01 : f32
    %85 = vector.broadcast %cst_29 : f32 to vector<2x6xf32>
    %86 = arith.mulf %85, %84 : vector<2x6xf32>
    %cst_30 = arith.constant 0.000000e+00 : f32
    %87 = vector.broadcast %cst_30 : f32 to vector<2x2xf32>
    %cst_31 = arith.constant 0.000000e+00 : f32
    %88 = vector.broadcast %cst_31 : f32 to vector<2x3xf32>
    %89 = tpu.concatenate %86, %87, %28, %88 in 1 : vector<2x6xf32>, vector<2x2xf32>, vector<2x5xf32>, vector<2x3xf32> -> vector<2x16xf32>
    %c0_32 = arith.constant 0 : index
    %c0_33 = arith.constant 0 : index
    %90 = vector.load %arg3[%c0_32, %c0_33] : memref<2x16xf32, #tpu.memory_space<vmem>>, vector<2x16xf32>
    tpu.vector_store %arg3[%c0_32, %c0_33], %89 {strides = array<i32>} : memref<2x16xf32, #tpu.memory_space<vmem>>, vector<2x16xf32>,
    return
  }
}

</mosaic_0001>

<llo_original>
// kernel: model_forward.1
$region0: #{model_forward.1}
  #allocation0 [shape = 'u32[]', space=smem, size = 0x4, offset = 0x4, fixed_abs, tag = 'smem constant byte address 0x4 - core index']
  #allocation1 [shape = 'u32[144,128]{1,0:T(1,128)}', space=vmem, size = 0x12000, scoped, tag = 'internal scratch']
  %s0 = inlined_call_operand.vmem [shape: f32[2,64], index: 0, kind: input, shape index: {}]
  %s1 = inlined_call_operand.vmem [shape: bf16[224,96], index: 1, kind: input, shape index: {}]
  %s2 = inlined_call_operand.vmem [shape: f32[144,96], index: 2, kind: input, shape index: {}]
  %s3 = inlined_call_operand.vmem [shape: f32[2,16], index: 3, kind: output, shape index: {}]
  %s4 = sld [smem:[#allocation0]]
  $region22: #{model_forward.1} parent=0
    _
  %s6 = ssub.s32 1, %s4
  %s7 = scalar_select 0, %s6, %s4
  // Predicated region
  $region2: #{model_forward.1} parent=0 // pred_check
    _
  $region3: #{model_forward.1} parent=0 // pred_check_branch
    %9 = sbr.rel (0) target = $region5
  $region4: #{model_forward.1} parent=0 // pred_region
    _
  $region5: #{model_forward.1} parent=0 // pred_fallthru
    _
  // Predicated region
  $region6: #{model_forward.1} parent=0 // pred_check
    _
  $region7: #{model_forward.1} parent=0 // pred_check_branch
    %11 = sbr.rel (0) target = $region9
  $region8: #{model_forward.1} parent=0 // pred_region
    _
  $region9: #{model_forward.1} parent=0 // pred_fallthru
    _
  // Predicated region
  $region10: #{model_forward.1} parent=0 // pred_check
    _
  $region11: #{model_forward.1} parent=0 // pred_check_branch
    %13 = sbr.rel (0) target = $region13
  $region12: #{model_forward.1} parent=0 // pred_region
    _
  $region13: #{model_forward.1} parent=0 // pred_fallthru
    _
  %v15 = vld [vmem:[%s2 + $0x88] sm:$0xff]
  %v16 = vld [vmem:[%s0] sm:$0x3]
  %v17 = vld [vmem:[%s1] sm:$0xf]
  %v18 = vld [vmem:[%s1 + $0x4] sm:$0xf]
  %v19 = vld [vmem:[%s1 + $0x8] sm:$0xf]
  %v20 = vld [vmem:[%s1 + $0xc] sm:$0xf]
  %v21 = vld [vmem:[%s1 + $0x10] sm:$0xf]
  %v22 = vld [vmem:[%s1 + $0x14] sm:$0xf]
  %v23 = vld [vmem:[%s1 + $0x18] sm:$0xf]
  %v24 = vld [vmem:[%s1 + $0x1c] sm:$0xf]
  %v25 = vpack.c.bf16 %v16, %v16
  %v26 = vlaneseq
  %v27 = vshrl.u32 %v26, 7
  %v28 = vsub.s32 0, %v27
  %v29 = vrot.slane %v15, %v28
  %v38 = vunpack.c.l.b16 %v17
  %v39 = vunpack.c.l.b16 %v18
  %v40 = vunpack.c.l.b16 %v19
  %v41 = vunpack.c.l.b16 %v20
  %v42 = vunpack.c.l.b16 %v21
  %v43 = vunpack.c.l.b16 %v22
  %v44 = vunpack.c.l.b16 %v23
  %v45 = vunpack.c.l.b16 %v24
  %v46 = vpack.c.b16 %v39, %v38
  %v47 = vpack.c.b16 %v41, %v40
  %v48 = vpack.c.b16 %v43, %v42
  %v49 = vpack.c.b16 %v45, %v44
  %vm54 = vcmask 523264
  %v56 = vsel %vm54, %v25, 0
  %58 = vmatprep.subr.bf16.mxu0 0
  %59 = vmatpush1.bf16.msra.mxu0 0
  %60 = vmatprep.subr.bf16.mxu0 0
  %61 = vmatpush1.bf16.msra.mxu0 0
  %62 = vmatprep.subr.bf16.mxu0 0
  %63 = vmatpush1.bf16.msra.mxu0 0
  %64 = vmatprep.subr.bf16.mxu0 0
  %65 = vmatpush1.bf16.msra.mxu0 0
  %66 = vmatprep.subr.bf16.mxu0 0
  %67 = vmatpush1.bf16.msra.mxu0 %v49
  %68 = vmatprep.subr.bf16.mxu0 0
  %69 = vmatpush1.bf16.msra.mxu0 %v48
  %70 = vmatprep.subr.bf16.mxu0 0
  %71 = vmatpush1.bf16.msra.mxu0 %v47
  %72 = vmatprep.subr.bf16.mxu0 0
  %73 = vmatpush1.bf16.msra.mxu0 %v46
  %74 = vmatprep.subr.bf16.mxu0 0
  %75 = vmatpush2.bf16.msra.mxu0 0
  %76 = vmatprep.subr.bf16.mxu0 0
  %77 = vmatpush2.bf16.msra.mxu0 0
  %78 = vmatprep.subr.bf16.mxu0 0
  %79 = vmatpush2.bf16.msra.mxu0 0
  %80 = vmatprep.subr.bf16.mxu0 0
  %81 = vmatpush2.bf16.msra.mxu0 0
  %82 = vmatprep.subr.bf16.mxu0 0
  %83 = vmatpush2.bf16.msra.mxu0 0
  %84 = vmatprep.subr.bf16.mxu0 0
  %85 = vmatpush2.bf16.msra.mxu0 0
  %86 = vmatprep.subr.bf16.mxu0 0
  %87 = vmatpush2.bf16.msra.mxu0 0
  %88 = vmatprep.subr.bf16.mxu0 0
  %89 = vmatpush2.bf16.msra.mxu0 0
  %90 = vmatprep.mubr.bf16.mxu0 0
  %91 = vmatmul.mubr.bf16.gmra.mxu0 %v56
  %v92 = vpop.f32.mrf.mxu0
  %v93 = vadd.f32 %v29, %v92
  %v94 = vpop.f32.mrf.mxu0
  %v95 = vpop.f32.mrf.mxu0
  %v96 = vpop.f32.mrf.mxu0
  %97 = vdwg.mxu0
  %v98 = vmax.f32 %v93, 0.0
  %v99 = vld [vmem:[%s1 + $0x20] sm:$0xf]
  %v100 = vld [vmem:[%s1 + $0x24] sm:$0xf]
  %v101 = vld [vmem:[%s1 + $0x28] sm:$0xf]
  %v102 = vld [vmem:[%s1 + $0x2c] sm:$0xf]
  %v103 = vpack.c.bf16 %v98, %v98
  %v104 = vlaneseq
  %v105 = vshrl.u32 %v104, 7
  %v106 = vsub.s32 1, %v105
  %v107 = vrot.slane %v15, %v106
  %109 = vrot.lane.b32.xlu0 %v103, 64
  %v110 = vpop.permute.xlu0 %109
  %v115 = vunpack.c.l.b16 %v99
  %v116 = vunpack.c.l.b16 %v100
  %v117 = vunpack.c.l.b16 %v101
  %v118 = vunpack.c.l.b16 %v102
  %v119 = vpack.c.b16 %v116, %v115
  %v120 = vpack.c.b16 %v118, %v117
  %vm123 = vcmask 261120
  %v125 = vsel %vm123, %v110, 0
  %127 = vmatprep.subr.bf16.mxu0 0
  %128 = vmatpush1.bf16.msra.mxu0 0
  %129 = vmatprep.subr.bf16.mxu0 0
  %130 = vmatpush1.bf16.msra.mxu0 0
  %131 = vmatprep.subr.bf16.mxu0 0
  %132 = vmatpush1.bf16.msra.mxu0 0
  %133 = vmatprep.subr.bf16.mxu0 0
  %134 = vmatpush1.bf16.msra.mxu0 0
  %135 = vmatprep.subr.bf16.mxu0 0
  %136 = vmatpush1.bf16.msra.mxu0 0
  %137 = vmatprep.subr.bf16.mxu0 0
  %138 = vmatpush1.bf16.msra.mxu0 0
  %139 = vmatprep.subr.bf16.mxu0 0
  %140 = vmatpush1.bf16.msra.mxu0 %v120
  %141 = vmatprep.subr.bf16.mxu0 0
  %142 = vmatpush1.bf16.msra.mxu0 %v119
  %143 = vmatprep.subr.bf16.mxu0 0
  %144 = vmatpush2.bf16.msra.mxu0 0
  %145 = vmatprep.subr.bf16.mxu0 0
  %146 = vmatpush2.bf16.msra.mxu0 0
  %147 = vmatprep.subr.bf16.mxu0 0
  %148 = vmatpush2.bf16.msra.mxu0 0
  %149 = vmatprep.subr.bf16.mxu0 0
  %150 = vmatpush2.bf16.msra.mxu0 0
  %151 = vmatprep.subr.bf16.mxu0 0
  %152 = vmatpush2.bf16.msra.mxu0 0
  %153 = vmatprep.subr.bf16.mxu0 0
  %154 = vmatpush2.bf16.msra.mxu0 0
  %155 = vmatprep.subr.bf16.mxu0 0
  %156 = vmatpush2.bf16.msra.mxu0 0
  %157 = vmatprep.subr.bf16.mxu0 0
  %158 = vmatpush2.bf16.msra.mxu0 0
  %159 = vmatprep.mubr.bf16.mxu0 0
  %160 = vmatmul.mubr.bf16.gmra.mxu0 %v125
  %v161 = vpop.f32.mrf.mxu0
  %v162 = vadd.f32 %v107, %v161
  %v163 = vpop.f32.mrf.mxu0
  %v164 = vpop.f32.mrf.mxu0
  %v165 = vpop.f32.mrf.mxu0
  %166 = vdwg.mxu0
  %vm167 = vcmask 33792
  %v168 = vsel %vm167, %v162, -inf
  %169 = vmax.xlane.f32.xlu0 %v168
  %v170 = vpop.xlane.xlu0 %169
  %v171 = vsub.f32 %v162, %v170
  %v172 = vmul.f32 %v171, 1.442695
  %v173 = vpow.pop %v172
  %v174 = vsel %vm167, %v173, 0.0
  %175 = vadd.xlane.f32.xlu0 %v174
  %v176 = vpop.xlane.xlu0 %175
  %v177 = vrcp.pop %v176
  %v178 = vmul.f32 %v173, %v177
  %v179 = vld [vmem:[%s2] sm:$0xff]
  %v180 = vld [vmem:[%s2 + $0x8] sm:$0xf]
  %vm181 = vcmask 15360
  %v183 = vsel %vm181, %v179, 0
  %v186 = vsel %vm181, %v180, 0
  %vm188 = vcmask 1041408
  %v190 = vsel %vm188, %v93, 0
  %192 = vmatprep.subr.mxu0 0.0
  %193 = vmatpush1.msra.mxu0 0.0
  %194 = vmatprep.subr.mxu0 0.0
  %195 = vmatpush1.msra.mxu0 0.0
  %196 = vmatprep.subr.mxu0 0.0
  %197 = vmatpush1.msra.mxu0 0.0
  %198 = vmatprep.subr.mxu0 0.0
  %199 = vmatpush1.msra.mxu0 0.0
  %200 = vmatprep.subr.mxu0 0.0
  %201 = vmatpush1.msra.mxu0 0.0
  %202 = vmatprep.subr.mxu0 0.0
  %203 = vmatpush1.msra.mxu0 0.0
  %204 = vmatprep.subr.mxu0 0.0
  %205 = vmatpush1.msra.mxu0 0.0
  %206 = vmatprep.subr.mxu0 0.0
  %207 = vmatpush1.msra.mxu0 0.0
  %208 = vmatprep.subr.mxu0 0.0
  %209 = vmatpush1.msra.mxu0 0.0
  %210 = vmatprep.subr.mxu0 0.0
  %211 = vmatpush1.msra.mxu0 0.0
  %212 = vmatprep.subr.mxu0 0.0
  %213 = vmatpush1.msra.mxu0 0.0
  %214 = vmatprep.subr.mxu0 0.0
  %215 = vmatpush1.msra.mxu0 0.0
  %216 = vmatprep.subr.mxu0 0.0
  %217 = vmatpush1.msra.mxu0 0.0
  %218 = vmatprep.subr.mxu0 0.0
  %219 = vmatpush1.msra.mxu0 0.0
  %220 = vmatprep.subr.mxu0 0.0
  %221 = vmatpush1.msra.mxu0 0.0
  %222 = vmatprep.subr.mxu0 0.0
  %223 = vmatpush1.msra.mxu0 %v190
  %224 = vmatprep.subr.mxu0 0.0
  %225 = vmatpush2.msra.mxu0 0.0
  %226 = vmatprep.subr.mxu0 0.0
  %227 = vmatpush2.msra.mxu0 0.0
  %228 = vmatprep.subr.mxu0 0.0
  %229 = vmatpush2.msra.mxu0 0.0
  %230 = vmatprep.subr.mxu0 0.0
  %231 = vmatpush2.msra.mxu0 0.0
  %232 = vmatprep.subr.mxu0 0.0
  %233 = vmatpush2.msra.mxu0 0.0
  %234 = vmatprep.subr.mxu0 0.0
  %235 = vmatpush2.msra.mxu0 0.0
  %236 = vmatprep.subr.mxu0 0.0
  %237 = vmatpush2.msra.mxu0 0.0
  %238 = vmatprep.subr.mxu0 0.0
  %239 = vmatpush2.msra.mxu0 0.0
  %240 = vmatprep.subr.mxu0 0.0
  %241 = vmatpush2.msra.mxu0 0.0
  %242 = vmatprep.subr.mxu0 0.0
  %243 = vmatpush2.msra.mxu0 0.0
  %244 = vmatprep.subr.mxu0 0.0
  %245 = vmatpush2.msra.mxu0 0.0
  %246 = vmatprep.subr.mxu0 0.0
  %247 = vmatpush2.msra.mxu0 0.0
  %248 = vmatprep.subr.mxu0 0.0
  %249 = vmatpush2.msra.mxu0 0.0
  %250 = vmatprep.subr.mxu0 0.0
  %251 = vmatpush2.msra.mxu0 0.0
  %252 = vmatprep.subr.mxu0 0.0
  %253 = vmatpush2.msra.mxu0 0.0
  %254 = vmatprep.subr.mxu0 0.0
  %255 = vmatpush2.msra.mxu0 0.0
  %256 = vmatprep.mubr.f32.mxu0 0.0
  %257 = vmatmul.mubr.f32.gmra.mxu0 %v183
  %v258 = vpop.f32.mrf.mxu0
  %v259 = vadd.f32 0.0, %v258
  %v260 = vpop.f32.mrf.mxu0
  %261 = vmatprep.mubr.f32.mxu0 0.0
  %262 = vmatmul.mubr.f32.gmra.mxu0 %v186
  %v263 = vpop.f32.mrf.mxu0
  %v264 = vadd.f32 0.0, %v263
  %v265 = vpop.f32.mrf.mxu0
  %266 = vdwg.mxu0
  %v267 = vld [vmem:[%s2 + $0x28] sm:$0xff]
  %v268 = vld [vmem:[%s2 + $0x30] sm:$0xf]
  %v269 = vld [vmem:[%s2 + $0x38] sm:$0xff]
  %v270 = vld [vmem:[%s2 + $0x40] sm:$0xf]
  %v271 = vmul.f32 %v267, %v259
  %v272 = vmul.f32 %v268, %v264
  %v273 = vld [vmem:[%s1 + $0x30] sm:$0xf]
  %v274 = vld [vmem:[%s1 + $0x34] sm:$0xf]
  %v275 = vld [vmem:[%s1 + $0x38] sm:$0xf]
  %v276 = vld [vmem:[%s1 + $0x3c] sm:$0xf]
  %v277 = vld [vmem:[%s1 + $0x40] sm:$0xf]
  %v278 = vld [vmem:[%s1 + $0x44] sm:$0xf]
  %v279 = vld [vmem:[%s1 + $0x48] sm:$0xf]
  %v280 = vld [vmem:[%s1 + $0x4c] sm:$0xf]
  %v281 = vpack.c.bf16 %v272, %v271
  %v290 = vunpack.c.l.b16 %v273
  %v291 = vunpack.c.l.b16 %v274
  %v292 = vunpack.c.l.b16 %v275
  %v293 = vunpack.c.l.b16 %v276
  %v294 = vunpack.c.l.b16 %v277
  %v295 = vunpack.c.l.b16 %v278
  %v296 = vunpack.c.l.b16 %v279
  %v297 = vunpack.c.l.b16 %v280
  %v298 = vpack.c.b16 %v291, %v290
  %v299 = vpack.c.b16 %v293, %v292
  %v300 = vpack.c.b16 %v295, %v294
  %v301 = vpack.c.b16 %v297, %v296
  %v307 = vsel %vm54, %v281, 0
  %309 = vmatprep.subr.bf16.mxu0 0
  %310 = vmatpush1.bf16.msra.mxu0 0
  %311 = vmatprep.subr.bf16.mxu0 0
  %312 = vmatpush1.bf16.msra.mxu0 0
  %313 = vmatprep.subr.bf16.mxu0 0
  %314 = vmatpush1.bf16.msra.mxu0 0
  %315 = vmatprep.subr.bf16.mxu0 0
  %316 = vmatpush1.bf16.msra.mxu0 0
  %317 = vmatprep.subr.bf16.mxu0 0
  %318 = vmatpush1.bf16.msra.mxu0 %v301
  %319 = vmatprep.subr.bf16.mxu0 0
  %320 = vmatpush1.bf16.msra.mxu0 %v300
  %321 = vmatprep.subr.bf16.mxu0 0
  %322 = vmatpush1.bf16.msra.mxu0 %v299
  %323 = vmatprep.subr.bf16.mxu0 0
  %324 = vmatpush1.bf16.msra.mxu0 %v298
  %325 = vmatprep.subr.bf16.mxu0 0
  %326 = vmatpush2.bf16.msra.mxu0 0
  %327 = vmatprep.subr.bf16.mxu0 0
  %328 = vmatpush2.bf16.msra.mxu0 0
  %329 = vmatprep.subr.bf16.mxu0 0
  %330 = vmatpush2.bf16.msra.mxu0 0
  %331 = vmatprep.subr.bf16.mxu0 0
  %332 = vmatpush2.bf16.msra.mxu0 0
  %333 = vmatprep.subr.bf16.mxu0 0
  %334 = vmatpush2.bf16.msra.mxu0 0
  %335 = vmatprep.subr.bf16.mxu0 0
  %336 = vmatpush2.bf16.msra.mxu0 0
  %337 = vmatprep.subr.bf16.mxu0 0
  %338 = vmatpush2.bf16.msra.mxu0 0
  %339 = vmatprep.subr.bf16.mxu0 0
  %340 = vmatpush2.bf16.msra.mxu0 0
  %341 = vmatprep.mubr.bf16.mxu0 0
  %342 = vmatmul.mubr.bf16.gmra.mxu0 %v307
  %v343 = vpop.f32.mrf.mxu0
  %v344 = vadd.f32 %v269, %v343
  %v345 = vpop.f32.mrf.mxu0
  %v346 = vpop.f32.mrf.mxu0
  %v347 = vadd.f32 %v270, %v346
  %v348 = vpop.f32.mrf.mxu0
  %349 = vdwg.mxu0
  %v350 = vmax.f32 %v344, 0.0
  %v351 = vmax.f32 %v347, 0.0
  %v352 = vld [vmem:[%s1 + $0x50] sm:$0xf]
  %v353 = vld [vmem:[%s1 + $0x54] sm:$0xf]
  %v354 = vld [vmem:[%s1 + $0x58] sm:$0xf]
  %v355 = vld [vmem:[%s1 + $0x5c] sm:$0xf]
  %v356 = vld [vmem:[%s1 + $0x60] sm:$0xf]
  %v357 = vld [vmem:[%s1 + $0x64] sm:$0xf]
  %v358 = vld [vmem:[%s1 + $0x68] sm:$0xf]
  %v359 = vld [vmem:[%s1 + $0x6c] sm:$0xf]
  %v360 = vpack.c.bf16 %v351, %v350
  %v361 = vlaneseq
  %v362 = vshrl.u32 %v361, 7
  %v363 = vsub.s32 2, %v362
  %v364 = vrot.slane %v15, %v363
  %v373 = vunpack.c.l.b16 %v352
  %v374 = vunpack.c.l.b16 %v353
  %v375 = vunpack.c.l.b16 %v354
  %v376 = vunpack.c.l.b16 %v355
  %v377 = vunpack.c.l.b16 %v356
  %v378 = vunpack.c.l.b16 %v357
  %v379 = vunpack.c.l.b16 %v358
  %v380 = vunpack.c.l.b16 %v359
  %v381 = vpack.c.b16 %v374, %v373
  %v382 = vpack.c.b16 %v376, %v375
  %v383 = vpack.c.b16 %v378, %v377
  %v384 = vpack.c.b16 %v380, %v379
  %v390 = vsel %vm54, %v360, 0
  %392 = vmatprep.subr.bf16.mxu0 0
  %393 = vmatpush1.bf16.msra.mxu0 0
  %394 = vmatprep.subr.bf16.mxu0 0
  %395 = vmatpush1.bf16.msra.mxu0 0
  %396 = vmatprep.subr.bf16.mxu0 0
  %397 = vmatpush1.bf16.msra.mxu0 0
  %398 = vmatprep.subr.bf16.mxu0 0
  %399 = vmatpush1.bf16.msra.mxu0 0
  %400 = vmatprep.subr.bf16.mxu0 0
  %401 = vmatpush1.bf16.msra.mxu0 %v384
  %402 = vmatprep.subr.bf16.mxu0 0
  %403 = vmatpush1.bf16.msra.mxu0 %v383
  %404 = vmatprep.subr.bf16.mxu0 0
  %405 = vmatpush1.bf16.msra.mxu0 %v382
  %406 = vmatprep.subr.bf16.mxu0 0
  %407 = vmatpush1.bf16.msra.mxu0 %v381
  %408 = vmatprep.subr.bf16.mxu0 0
  %409 = vmatpush2.bf16.msra.mxu0 0
  %410 = vmatprep.subr.bf16.mxu0 0
  %411 = vmatpush2.bf16.msra.mxu0 0
  %412 = vmatprep.subr.bf16.mxu0 0
  %413 = vmatpush2.bf16.msra.mxu0 0
  %414 = vmatprep.subr.bf16.mxu0 0
  %415 = vmatpush2.bf16.msra.mxu0 0
  %416 = vmatprep.subr.bf16.mxu0 0
  %417 = vmatpush2.bf16.msra.mxu0 0
  %418 = vmatprep.subr.bf16.mxu0 0
  %419 = vmatpush2.bf16.msra.mxu0 0
  %420 = vmatprep.subr.bf16.mxu0 0
  %421 = vmatpush2.bf16.msra.mxu0 0
  %422 = vmatprep.subr.bf16.mxu0 0
  %423 = vmatpush2.bf16.msra.mxu0 0
  %424 = vmatprep.mubr.bf16.mxu0 0
  %425 = vmatmul.mubr.bf16.gmra.mxu0 %v390
  %v426 = vpop.f32.mrf.mxu0
  %v427 = vadd.f32 %v364, %v426
  %v428 = vpop.f32.mrf.mxu0
  %v429 = vpop.f32.mrf.mxu0
  %v430 = vadd.f32 %v364, %v429
  %v431 = vpop.f32.mrf.mxu0
  %432 = vdwg.mxu0
  %v433 = vsub.f32 %v427, %v259
  %v434 = vsub.f32 %v430, %v264
  %v435 = vmul.f32 %v433, %v433
  %v436 = vmul.f32 %v434, %v434
  %v437 = vld [vmem:[%s2 + $0x48] sm:$0xff]
  %v438 = vld [vmem:[%s2 + $0x50] sm:$0xff]
  %v439 = vld [vmem:[%s2 + $0x58] sm:$0xff]
  %v440 = vld [vmem:[%s2 + $0x60] sm:$0xff]
  %v441 = vld [vmem:[%s2 + $0x68] sm:$0xff]
  %v442 = vld [vmem:[%s2 + $0x70] sm:$0xff]
  %v443 = vld [vmem:[%s2 + $0x78] sm:$0xff]
  %v444 = vld [vmem:[%s2 + $0x80] sm:$0xff]
  %v446 = vsel %vm54, %v435, 0
  %v449 = vsel %vm54, %v436, 0
  %451 = vmatprep.subr.mxu0 0.0
  %452 = vmatpush1.msra.mxu0 0.0
  %453 = vmatprep.subr.mxu0 0.0
  %454 = vmatpush1.msra.mxu0 0.0
  %455 = vmatprep.subr.mxu0 0.0
  %456 = vmatpush1.msra.mxu0 0.0
  %457 = vmatprep.subr.mxu0 0.0
  %458 = vmatpush1.msra.mxu0 0.0
  %459 = vmatprep.subr.mxu0 0.0
  %460 = vmatpush1.msra.mxu0 0.0
  %461 = vmatprep.subr.mxu0 0.0
  %462 = vmatpush1.msra.mxu0 0.0
  %463 = vmatprep.subr.mxu0 0.0
  %464 = vmatpush1.msra.mxu0 0.0
  %465 = vmatprep.subr.mxu0 0.0
  %466 = vmatpush1.msra.mxu0 0.0
  %467 = vmatprep.subr.mxu0 0.0
  %468 = vmatpush1.msra.mxu0 %v444
  %469 = vmatprep.subr.mxu0 0.0
  %470 = vmatpush1.msra.mxu0 %v443
  %471 = vmatprep.subr.mxu0 0.0
  %472 = vmatpush1.msra.mxu0 %v442
  %473 = vmatprep.subr.mxu0 0.0
  %474 = vmatpush1.msra.mxu0 %v441
  %475 = vmatprep.subr.mxu0 0.0
  %476 = vmatpush1.msra.mxu0 %v440
  %477 = vmatprep.subr.mxu0 0.0
  %478 = vmatpush1.msra.mxu0 %v439
  %479 = vmatprep.subr.mxu0 0.0
  %480 = vmatpush1.msra.mxu0 %v438
  %481 = vmatprep.subr.mxu0 0.0
  %482 = vmatpush1.msra.mxu0 %v437
  %483 = vmatprep.subr.mxu0 0.0
  %484 = vmatpush2.msra.mxu0 0.0
  %485 = vmatprep.subr.mxu0 0.0
  %486 = vmatpush2.msra.mxu0 0.0
  %487 = vmatprep.subr.mxu0 0.0
  %488 = vmatpush2.msra.mxu0 0.0
  %489 = vmatprep.subr.mxu0 0.0
  %490 = vmatpush2.msra.mxu0 0.0
  %491 = vmatprep.subr.mxu0 0.0
  %492 = vmatpush2.msra.mxu0 0.0
  %493 = vmatprep.subr.mxu0 0.0
  %494 = vmatpush2.msra.mxu0 0.0
  %495 = vmatprep.subr.mxu0 0.0
  %496 = vmatpush2.msra.mxu0 0.0
  %497 = vmatprep.subr.mxu0 0.0
  %498 = vmatpush2.msra.mxu0 0.0
  %499 = vmatprep.subr.mxu0 0.0
  %500 = vmatpush2.msra.mxu0 0.0
  %501 = vmatprep.subr.mxu0 0.0
  %502 = vmatpush2.msra.mxu0 0.0
  %503 = vmatprep.subr.mxu0 0.0
  %504 = vmatpush2.msra.mxu0 0.0
  %505 = vmatprep.subr.mxu0 0.0
  %506 = vmatpush2.msra.mxu0 0.0
  %507 = vmatprep.subr.mxu0 0.0
  %508 = vmatpush2.msra.mxu0 0.0
  %509 = vmatprep.subr.mxu0 0.0
  %510 = vmatpush2.msra.mxu0 0.0
  %511 = vmatprep.subr.mxu0 0.0
  %512 = vmatpush2.msra.mxu0 0.0
  %513 = vmatprep.subr.mxu0 0.0
  %514 = vmatpush2.msra.mxu0 0.0
  %515 = vmatprep.mubr.f32.mxu0 0.0
  %516 = vmatmul.mubr.f32.gmra.mxu0 %v446
  %v517 = vpop.f32.mrf.mxu0
  %v518 = vadd.f32 0.0, %v517
  %v519 = vpop.f32.mrf.mxu0
  %520 = vmatprep.mubr.f32.mxu0 0.0
  %521 = vmatmul.mubr.f32.gmra.mxu0 %v449
  %v522 = vpop.f32.mrf.mxu0
  %v523 = vadd.f32 0.0, %v522
  %v524 = vpop.f32.mrf.mxu0
  %525 = vdwg.mxu0
  %v526 = vrsqrt.pop %v518
  %v527 = vmul.f32 %v518, %v526
  %vm528 = vcmp.eq.f32.partialorder %v518, inf
  %v529 = vsel %vm528, %v518, %v527
  %vm530 = vcmp.eq.f32.partialorder %v518, 0.0
  %v531 = vand.u32 %v518, 2147483648
  %v532 = vsel %vm530, %v531, %v529
  %v533 = vrsqrt.pop %v523
  %v534 = vmul.f32 %v523, %v533
  %vm535 = vcmp.eq.f32.partialorder %v523, inf
  %v536 = vsel %vm535, %v523, %v534
  %vm537 = vcmp.eq.f32.partialorder %v523, 0.0
  %v538 = vand.u32 %v523, 2147483648
  %v539 = vsel %vm537, %v538, %v536
  %v540 = vld [vmem:[%s2 + $0x10] sm:$0xff]
  %v541 = vld [vmem:[%s2 + $0x18] sm:$0xf]
  %v542 = vld [vmem:[%s2 + $0x20] sm:$0x3]
  %544 = vset.pattern.permute.xlu0 0
  %545 = vperm.xlu0 %544, %v532
  %v546 = vpop.permute.xlu0 %545
  %549 = vset.pattern.permute.xlu0 0
  %550 = vperm.xlu0 %549, %v539
  %v551 = vpop.permute.xlu0 %550
  %v553 = vmul.f32 %v546, %v540
  %v554 = vmul.f32 %v551, %v541
  %555 = vset.pattern.permute.xlu0 1
  %556 = vperm.xlu0 %555, %v532
  %v557 = vpop.permute.xlu0 %556
  %559 = vset.pattern.permute.xlu0 1
  %560 = vperm.xlu0 %559, %v539
  %v561 = vpop.permute.xlu0 %560
  %v563 = vmul.f32 %v557, %v540
  %v564 = vmul.f32 %v561, %v541
  %567 = vrot.lane.b32.xlu0 %v563, 6
  %v568 = vpop.permute.xlu0 %567
  %569 = vrot.lane.b32.xlu0 %v564, 6
  %v570 = vpop.permute.xlu0 %569
  %vm573 = vcmask 48128
  %v574 = vsel %vm573, %v553, %v568
  %v575 = vsel %vm573, %v554, %v570
  %vm576 = vcmask 97280
  %v578 = vsel %vm576, %v542, 0
  %vm580 = vcmask 1043456
  %v582 = vsel %vm580, %v575, 0
  %584 = vmatprep.subr.mxu0 0.0
  %585 = vmatpush1.msra.mxu0 0.0
  %586 = vmatprep.subr.mxu0 0.0
  %587 = vmatpush1.msra.mxu0 0.0
  %588 = vmatprep.subr.mxu0 0.0
  %589 = vmatpush1.msra.mxu0 0.0
  %590 = vmatprep.subr.mxu0 0.0
  %591 = vmatpush1.msra.mxu0 0.0
  %592 = vmatprep.subr.mxu0 0.0
  %593 = vmatpush1.msra.mxu0 0.0
  %594 = vmatprep.subr.mxu0 0.0
  %595 = vmatpush1.msra.mxu0 0.0
  %596 = vmatprep.subr.mxu0 0.0
  %597 = vmatpush1.msra.mxu0 0.0
  %598 = vmatprep.subr.mxu0 0.0
  %599 = vmatpush1.msra.mxu0 0.0
  %600 = vmatprep.subr.mxu0 0.0
  %601 = vmatpush1.msra.mxu0 0.0
  %602 = vmatprep.subr.mxu0 0.0
  %603 = vmatpush1.msra.mxu0 0.0
  %604 = vmatprep.subr.mxu0 0.0
  %605 = vmatpush1.msra.mxu0 0.0
  %606 = vmatprep.subr.mxu0 0.0
  %607 = vmatpush1.msra.mxu0 0.0
  %608 = vmatprep.subr.mxu0 0.0
  %609 = vmatpush1.msra.mxu0 0.0
  %610 = vmatprep.subr.mxu0 0.0
  %611 = vmatpush1.msra.mxu0 0.0
  %612 = vmatprep.subr.mxu0 0.0
  %613 = vmatpush1.msra.mxu0 %v582
  %614 = vmatprep.subr.mxu0 0.0
  %615 = vmatpush1.msra.mxu0 %v574
  %616 = vmatprep.subr.mxu0 0.0
  %617 = vmatpush2.msra.mxu0 0.0
  %618 = vmatprep.subr.mxu0 0.0
  %619 = vmatpush2.msra.mxu0 0.0
  %620 = vmatprep.subr.mxu0 0.0
  %621 = vmatpush2.msra.mxu0 0.0
  %622 = vmatprep.subr.mxu0 0.0
  %623 = vmatpush2.msra.mxu0 0.0
  %624 = vmatprep.subr.mxu0 0.0
  %625 = vmatpush2.msra.mxu0 0.0
  %626 = vmatprep.subr.mxu0 0.0
  %627 = vmatpush2.msra.mxu0 0.0
  %628 = vmatprep.subr.mxu0 0.0
  %629 = vmatpush2.msra.mxu0 0.0
  %630 = vmatprep.subr.mxu0 0.0
  %631 = vmatpush2.msra.mxu0 0.0
  %632 = vmatprep.subr.mxu0 0.0
  %633 = vmatpush2.msra.mxu0 0.0
  %634 = vmatprep.subr.mxu0 0.0
  %635 = vmatpush2.msra.mxu0 0.0
  %636 = vmatprep.subr.mxu0 0.0
  %637 = vmatpush2.msra.mxu0 0.0
  %638 = vmatprep.subr.mxu0 0.0
  %639 = vmatpush2.msra.mxu0 0.0
  %640 = vmatprep.subr.mxu0 0.0
  %641 = vmatpush2.msra.mxu0 0.0
  %642 = vmatprep.subr.mxu0 0.0
  %643 = vmatpush2.msra.mxu0 0.0
  %644 = vmatprep.subr.mxu0 0.0
  %645 = vmatpush2.msra.mxu0 0.0
  %646 = vmatprep.subr.mxu0 0.0
  %647 = vmatpush2.msra.mxu0 0.0
  %648 = vmatprep.mubr.f32.mxu0 0.0
  %649 = vmatmul.mubr.f32.gmra.mxu0 %v578
  %v650 = vpop.f32.mrf.mxu0
  %v651 = vadd.f32 0.0, %v650
  %v652 = vpop.f32.mrf.mxu0
  %653 = vdwg.mxu0
  %v654 = vsub.f32 0.0, %v651
  %vm655 = vcmask 41984
  %v656 = vsel %vm655, %v654, -inf
  %657 = vmax.xlane.f32.xlu0 %v656
  %v658 = vpop.xlane.xlu0 %657
  %v659 = vsub.f32 %v654, %v658
  %v660 = vmul.f32 %v659, 1.442695
  %v661 = vpow.pop %v660
  %v662 = vsel %vm655, %v661, 0.0
  %663 = vadd.xlane.f32.xlu0 %v662
  %v664 = vpop.xlane.xlu0 %663
  %v665 = vrcp.pop %v664
  %v666 = vmul.f32 %v661, %v665
  %vm667 = vcmask 91184
  %v668 = vsel %vm667, %v651, -inf
  %669 = vmax.xlane.f32.xlu0 %v668
  %v670 = vpop.xlane.xlu0 %669
  %v671 = vsub.f32 %v651, %v670
  %v672 = vmul.f32 %v671, 1.442695
  %v673 = vpow.pop %v672
  %675 = vrot.lane.b32.xlu0 %v673, 122
  %v676 = vpop.permute.xlu0 %675
  %v678 = vsel %vm655, %v676, 0.0
  %679 = vadd.xlane.f32.xlu0 %v678
  %v680 = vpop.xlane.xlu0 %679
  %v681 = vrcp.pop %v680
  %v682 = vmul.f32 %v673, %v681
  %684 = vrot.lane.b32.xlu0 %v682, 122
  %v685 = vpop.permute.xlu0 %684
  %v687 = vadd.f32 %v666, %v685
  %v688 = vmul.f32 %v687, 0.5
  %690 = vrot.lane.b32.xlu0 %v178, 8
  %v691 = vpop.permute.xlu0 %690
  %v693 = vsel %vm573, %v688, 0.0
  %vm694 = vcmask 64512
  %v695 = vsel %vm694, %v693, %v691
  %vm696 = vcmask 105472
  %v697 = vsel %vm696, %v695, 0.0
  %vm698 = vcmask 123904
  %699 = vst.msk [vmem:[%s3] sm:$0x3] %vm698, %v697
  // Predicated region
  $region14: #{model_forward.1} parent=0 // pred_check
    _
  $region15: #{model_forward.1} parent=0 // pred_check_branch
    %701 = sbr.rel (0) target = $region17
  $region16: #{model_forward.1} parent=0 // pred_region
    _
  $region17: #{model_forward.1} parent=0 // pred_fallthru
    _
  // Predicated region
  $region18: #{model_forward.1} parent=0 // pred_check
    _
  $region19: #{model_forward.1} parent=0 // pred_check_branch
    %703 = sbr.rel (0) target = $region21
  $region20: #{model_forward.1} parent=0 // pred_region
    _
  $region21: #{model_forward.1} parent=0 // pred_fallthru
    _

</llo_original>
